<compile_context>
chip_gen: v7x
topology: tpu7x:2x2x1
jax: 0.10.0
libtpu: 0.0.40
codegen_flags: <defaults>
</compile_context>

<pallas_src>
import jax
import jax.numpy as jnp
import numpy as np
from jax.experimental import pallas as pl
from jax.experimental.pallas import tpu as pltpu


def _round_up(x, m):
    return ((x + m - 1) // m) * m


# ---------------------------------------------------------------------------
# Kernel
# ---------------------------------------------------------------------------
def lstm_cell_kernel(xh_ref, c_ref, w_ref, b_ref, h_out_ref, c_out_ref):
    # xh_ref: (TB, K)        -- [x | h_padded] batch tile
    # c_ref : (TB, HCP)      -- cell-state batch tile
    # w_ref : (K, 4*HCP)     -- fused gate weights, resident across grid steps
    # b_ref : (1, 4*HCP)     -- fused gate bias
    xh = xh_ref[...].astype(jnp.float32)
    c = c_ref[...].astype(jnp.float32)

    # One MXU matmul for all four gates, f32 accumulation, bias fused as a
    # single broadcast add on the (TB, 4*HCP) slab.
    gates = jnp.dot(xh, w_ref[...], preferred_element_type=jnp.float32) + b_ref[...]

    hcp = c_ref.shape[-1]          # multiple of 128 -> static lane-group slices
    forget_gate = jax.nn.sigmoid(gates[:, 0 * hcp:1 * hcp])
    input_gate = jax.nn.sigmoid(gates[:, 1 * hcp:2 * hcp])
    mod_gate = jnp.tanh(gates[:, 3 * hcp:4 * hcp])
    c_new = c * forget_gate + mod_gate * input_gate            # consume f,i,m first
    output_gate = jax.nn.sigmoid(gates[:, 2 * hcp:3 * hcp])    # then o (vreg pressure)
    h_new = output_gate * jnp.tanh(c_new)

    h_out_ref[...] = h_new.astype(h_out_ref.dtype)
    c_out_ref[...] = c_new.astype(c_out_ref.dtype)


# ---------------------------------------------------------------------------
# Parameter packing: (4, ic, hc)/(4, hc, hc)/(4, 1, hc) -> fused lane-dense form
# ---------------------------------------------------------------------------
def pack_params(wx, wh, b, hcp):
    """wx: (4, ic, hc), wh: (4, hc, hc), b: (4, 1, hc); gate order [f, i, o, m].

    Returns W: (ic + hcp, 4*hcp), bias: (1, 4*hcp), zero-padded so that padded
    lanes produce c_pad = 0, h_pad = 0 (harmless)."""
    _, ic, hc = wx.shape
    pad_c = hcp - hc
    wx_p = jnp.pad(wx, ((0, 0), (0, 0), (0, pad_c)))            # (4, ic,  hcp)
    wh_p = jnp.pad(wh, ((0, 0), (0, pad_c), (0, pad_c)))        # (4, hcp, hcp)
    b_p = jnp.pad(b, ((0, 0), (0, 0), (0, pad_c)))              # (4, 1,   hcp)

    wx_f = wx_p.transpose(1, 0, 2).reshape(ic, 4 * hcp)         # (ic,  4*hcp)
    wh_f = wh_p.transpose(1, 0, 2).reshape(hcp, 4 * hcp)        # (hcp, 4*hcp)
    w = jnp.concatenate([wx_f, wh_f], axis=0)                   # (ic+hcp, 4*hcp)
    bias = b_p.transpose(1, 0, 2).reshape(1, 4 * hcp)           # (1, 4*hcp)
    return w, bias


# ---------------------------------------------------------------------------
# Wrapper
# ---------------------------------------------------------------------------
def naive_lstm_cell(x, h, c, wx, wh, b, *, block_b=None):
    B, ic = x.shape
    hc = h.shape[1]
    hcp = _round_up(hc, 128)                  # lane-dense hidden width
    if block_b is None:
        block_b = min(256, _round_up(B, 8))   # batch tile (multiple of 8, f32)
    block_b = _round_up(block_b, 8)
    b_pad = _round_up(B, block_b)
    k = ic + hcp

    # Fused, padded weights / bias (layout plumbing only, done under jit).
    w_f, bias_f = pack_params(wx, wh, b, hcp)

    # [x | h] slab and padded cell state; padded rows/lanes are zeros.
    xh = jnp.concatenate(
        [jnp.pad(x.astype(jnp.float32), ((0, b_pad - B), (0, 0))),
         jnp.pad(h.astype(jnp.float32), ((0, b_pad - B), (0, hcp - hc)))],
        axis=1)                               # (b_pad, ic + hcp)
    c_p = jnp.pad(c.astype(jnp.float32), ((0, b_pad - B), (0, hcp - hc)))

    grid = (b_pad // block_b,)
    h_new_p, c_new_p = pl.pallas_call(
        lstm_cell_kernel,
        out_shape=(
            jax.ShapeDtypeStruct((b_pad, hcp), x.dtype),
            jax.ShapeDtypeStruct((b_pad, hcp), x.dtype),
        ),
        grid_spec=pltpu.PrefetchScalarGridSpec(
            num_scalar_prefetch=0,
            grid=grid,
            in_specs=[
                pl.BlockSpec((block_b, k), lambda i: (i, 0)),        # xh tiles stream
                pl.BlockSpec((block_b, hcp), lambda i: (i, 0)),      # c tiles stream
                pl.BlockSpec((k, 4 * hcp), lambda i: (0, 0)),        # weights resident
                pl.BlockSpec((1, 4 * hcp), lambda i: (0, 0)),        # bias resident
            ],
            out_specs=(
                pl.BlockSpec((block_b, hcp), lambda i: (i, 0)),
                pl.BlockSpec((block_b, hcp), lambda i: (i, 0)),
            ),
        ),
        compiler_params=pltpu.CompilerParams(
            dimension_semantics=("parallel",),          # megacore / v7x 2-TC split
            vmem_limit_bytes=48 * 1024 * 1024,          # fits v5e/v6e/v7x budgets
        ),
    )(xh, c_p, w_f, bias_f)

    # Strip batch / hidden padding.
    return h_new_p[:B, :hc], c_new_p[:B, :hc]
    # TODO(synk): when driving a full sequence, move the time loop into the grid
    # (trailing "arbitrary" axis) with h/c in VMEM scratch and weights pinned,
    # instead of one pallas_call per timestep.


# ---------------------------------------------------------------------------
# Reference + init (match the PyTorch module semantics)
# ---------------------------------------------------------------------------
def init_params(key, ic, hc, dtype=jnp.float32):
    """Deterministic init mimicking PyTorch nn.Linear default (U[-1/sqrt(fan_in), +])."""
    keys = jax.random.split(key, 16)
    ki = iter(keys)

    def lin(fan_in, fan_out):
        bound = 1.0 / np.sqrt(fan_in)
        w = jax.random.uniform(next(ki), (fan_in, fan_out), dtype, -bound, bound)
        bias = jax.random.uniform(next(ki), (fan_out,), dtype, -bound, bound)
        return w, bias

    wx_list, wh_list, b_list = [], [], []
    for _ in range(4):                      # gate order: forget, input, output, mod
        w_i, b_i = lin(ic, hc)              # input-side linear
        w_h, b_h = lin(hc, hc)              # hidden-side linear
        wx_list.append(w_i)
        wh_list.append(w_h)
        b_list.append((b_i + b_h).reshape(1, hc))
    wx = jnp.stack(wx_list, axis=0)         # (4, ic, hc)
    wh = jnp.stack(wh_list, axis=0)         # (4, hc, hc)
    b = jnp.stack(b_list, axis=0)           # (4, 1, hc)
    return wx, wh, b


def reference_lstm_cell(x, h, c, wx, wh, b):
    """Plain-JAX reference reproducing the PyTorch forward semantics."""
    def gate(k):
        return x @ wx[k] + h @ wh[k] + b[k]
    f = jax.nn.sigmoid(gate(0))
    i = jax.nn.sigmoid(gate(1))
    o = jax.nn.sigmoid(gate(2))
    m = jnp.tanh(gate(3))
    c_new = c * f + m * i
    h_new = o * jnp.tanh(c_new)
    return h_new, c_new


if __name__ == "__main__":
    B, ic, hc = 8, 16, 32
    key = jax.random.PRNGKey(0)
    k_x, k_h, k_c, k_p = jax.random.split(key, 4)

    x = jax.random.normal(k_x, (B, ic), jnp.float32)
    h = jax.random.normal(k_h, (B, hc), jnp.float32)
    c = jax.random.normal(k_c, (B, hc), jnp.float32)
    wx, wh, b = init_params(k_p, ic, hc)

    h_new, c_new = jax.jit(naive_lstm_cell)(x, h, c, wx, wh, b)
    jax.block_until_ready((h_new, c_new))

    h_ref, c_ref = reference_lstm_cell(x, h, c, wx, wh, b)
    assert np.allclose(np.asarray(h_new), np.asarray(h_ref), atol=1e-5, rtol=1e-5)
    assert np.allclose(np.asarray(c_new), np.asarray(c_ref), atol=1e-5, rtol=1e-5)

    print("KERNEL_OK")
</pallas_src>

<mosaic_0001>
module attributes {stable_mosaic.version = 11 : i64} {
  func.func @lstm_cell_kernel(%arg0: i32, %arg1: memref<8x144xf32, #tpu.memory_space<vmem>>, %arg2: memref<8x128xf32, #tpu.memory_space<vmem>>, %arg3: memref<144x512xf32, #tpu.memory_space<vmem>>, %arg4: memref<1x512xf32, #tpu.memory_space<vmem>>, %arg5: memref<8x128xf32, #tpu.memory_space<vmem>>, %arg6: memref<8x128xf32, #tpu.memory_space<vmem>>) attributes {dimension_semantics = [#tpu.dimension_semantics<parallel>], iteration_bounds = array<i64: 1>, scalar_prefetch = 0 : i64, scratch_operands = 0 : i64, tpu.core_type = #tpu.core_type<tc>, window_params = [{transform_indices = @transform_0, window_bounds = array<i64: 8, 144>}, {transform_indices = @transform_1, window_bounds = array<i64: 8, 128>}, {pipeline_mode = #tpu.pipeline_mode<synchronous>, transform_indices = @transform_2, window_bounds = array<i64: 144, 512>}, {pipeline_mode = #tpu.pipeline_mode<synchronous>, transform_indices = @transform_3, window_bounds = array<i64: 1, 512>}, {transform_indices = @transform_4, window_bounds = array<i64: 8, 128>}, {transform_indices = @transform_5, window_bounds = array<i64: 8, 128>}]} {
    %c0 = arith.constant 0 : index
    %c0_0 = arith.constant 0 : index
    %0 = vector.load %arg1[%c0, %c0_0] : memref<8x144xf32, #tpu.memory_space<vmem>>, vector<8x144xf32>
    %c0_1 = arith.constant 0 : index
    %c0_2 = arith.constant 0 : index
    %1 = vector.load %arg2[%c0_1, %c0_2] : memref<8x128xf32, #tpu.memory_space<vmem>>, vector<8x128xf32>
    %c0_3 = arith.constant 0 : index
    %c0_4 = arith.constant 0 : index
    %2 = vector.load %arg3[%c0_3, %c0_4] : memref<144x512xf32, #tpu.memory_space<vmem>>, vector<144x512xf32>
    %cst = arith.constant dense<0.000000e+00> : vector<8x512xf32>
    %3 = tpu.matmul %0, %2, %cst {dimension_numbers = #tpu.dot_dimension_numbers<[1], [0], [0], [1], [0, 0, 1, 1], [], []>} : vector<8x144xf32>, vector<144x512xf32>, vector<8x512xf32> -> vector<8x512xf32>
    %c0_5 = arith.constant 0 : index
    %c0_6 = arith.constant 0 : index
    %4 = vector.load %arg4[%c0_5, %c0_6] : memref<1x512xf32, #tpu.memory_space<vmem>>, vector<1x512xf32>
    %5 = vector.broadcast %4 : vector<1x512xf32> to vector<8x512xf32>
    %6 = arith.addf %3, %5 : vector<8x512xf32>
    %7 = vector.extract_strided_slice %6 {offsets = [0, 0], sizes = [8, 128], strides = [1, 1]} : vector<8x512xf32> to vector<8x128xf32>
    %8 = arith.negf %7 : vector<8x128xf32>
    %9 = math.exp %8 : vector<8x128xf32>
    %cst_7 = arith.constant 1.000000e+00 : f32
    %10 = vector.broadcast %cst_7 : f32 to vector<8x128xf32>
    %11 = arith.addf %10, %9 : vector<8x128xf32>
    %12 = arith.divf %10, %11 : vector<8x128xf32>
    %13 = vector.extract_strided_slice %6 {offsets = [0, 128], sizes = [8, 128], strides = [1, 1]} : vector<8x512xf32> to vector<8x128xf32>
    %14 = arith.negf %13 : vector<8x128xf32>
    %15 = math.exp %14 : vector<8x128xf32>
    %cst_8 = arith.constant 1.000000e+00 : f32
    %16 = vector.broadcast %cst_8 : f32 to vector<8x128xf32>
    %17 = arith.addf %16, %15 : vector<8x128xf32>
    %18 = arith.divf %16, %17 : vector<8x128xf32>
    %19 = vector.extract_strided_slice %6 {offsets = [0, 384], sizes = [8, 128], strides = [1, 1]} : vector<8x512xf32> to vector<8x128xf32>
    %20 = math.tanh %19 : vector<8x128xf32>
    %21 = arith.mulf %1, %12 : vector<8x128xf32>
    %22 = arith.mulf %20, %18 : vector<8x128xf32>
    %23 = arith.addf %21, %22 : vector<8x128xf32>
    %24 = vector.extract_strided_slice %6 {offsets = [0, 256], sizes = [8, 128], strides = [1, 1]} : vector<8x512xf32> to vector<8x128xf32>
    %25 = arith.negf %24 : vector<8x128xf32>
    %26 = math.exp %25 : vector<8x128xf32>
    %cst_9 = arith.constant 1.000000e+00 : f32
    %27 = vector.broadcast %cst_9 : f32 to vector<8x128xf32>
    %28 = arith.addf %27, %26 : vector<8x128xf32>
    %29 = arith.divf %27, %28 : vector<8x128xf32>
    %30 = math.tanh %23 : vector<8x128xf32>
    %31 = arith.mulf %29, %30 : vector<8x128xf32>
    %c0_10 = arith.constant 0 : index
    %c0_11 = arith.constant 0 : index
    %32 = vector.load %arg5[%c0_10, %c0_11] : memref<8x128xf32, #tpu.memory_space<vmem>>, vector<8x128xf32>
    tpu.vector_store %arg5[%c0_10, %c0_11], %31 {strides = array<i32>} : memref<8x128xf32, #tpu.memory_space<vmem>>, vector<8x128xf32>,
    %c0_12 = arith.constant 0 : index
    %c0_13 = arith.constant 0 : index
    %33 = vector.load %arg6[%c0_12, %c0_13] : memref<8x128xf32, #tpu.memory_space<vmem>>, vector<8x128xf32>
    tpu.vector_store %arg6[%c0_12, %c0_13], %23 {strides = array<i32>} : memref<8x128xf32, #tpu.memory_space<vmem>>, vector<8x128xf32>,
    return
  }
  func.func @transform_0(%arg0: i32) -> (i32, i32) {
    %c0_i32 = arith.constant 0 : i32
    %c0_i32_0 = arith.constant 0 : i32
    return %arg0, %c0_i32 : i32, i32
  }
  func.func @transform_1(%arg0: i32) -> (i32, i32) {
    %c0_i32 = arith.constant 0 : i32
    %c0_i32_0 = arith.constant 0 : i32
    return %arg0, %c0_i32 : i32, i32
  }
  func.func @transform_2(%arg0: i32) -> (i32, i32) {
    %c0_i32 = arith.constant 0 : i32
    %c0_i32_0 = arith.constant 0 : i32
    %c0_i32_1 = arith.constant 0 : i32
    return %c0_i32, %c0_i32_0 : i32, i32
  }
  func.func @transform_3(%arg0: i32) -> (i32, i32) {
    %c0_i32 = arith.constant 0 : i32
    %c0_i32_0 = arith.constant 0 : i32
    %c0_i32_1 = arith.constant 0 : i32
    return %c0_i32, %c0_i32_0 : i32, i32
  }
  func.func @transform_4(%arg0: i32) -> (i32, i32) {
    %c0_i32 = arith.constant 0 : i32
    %c0_i32_0 = arith.constant 0 : i32
    return %arg0, %c0_i32 : i32, i32
  }
  func.func @transform_5(%arg0: i32) -> (i32, i32) {
    %c0_i32 = arith.constant 0 : i32
    %c0_i32_0 = arith.constant 0 : i32
    return %arg0, %c0_i32 : i32, i32
  }
}

</mosaic_0001>

<llo_original>
// kernel: naive_lstm_cell.1
$region0: #{naive_lstm_cell.1}
  #allocation0 [shape = 'u32[]', space=smem, size = 0x4, offset = 0x4, fixed_abs, tag = 'smem constant byte address 0x4 - core index']
  #allocation1 [shape = 'u32[144,128]{1,0:T(1,128)}', space=vmem, size = 0x12000, scoped, tag = 'internal scratch']
  %s0 = inlined_call_operand.vmem [shape: f32[8,144], index: 0, kind: input, shape index: {}]
  %s1 = inlined_call_operand.vmem [shape: f32[8,128], index: 1, kind: input, shape index: {}]
  %s2 = inlined_call_operand.vmem [shape: f32[144,512], index: 2, kind: input, shape index: {}]
  %s3 = inlined_call_operand.vmem [shape: f32[1,512], index: 3, kind: input, shape index: {}]
  %s4 = inlined_call_operand.hbm [shape: f32[8,128], index: 4, kind: output, shape index: {0}]
  %s5 = inlined_call_operand.hbm [shape: f32[8,128], index: 5, kind: output, shape index: {1}]
  %6 = xla_tuple %s4, %s5
  %s7 = sld [smem:[#allocation0]]
  $region34: #{naive_lstm_cell.1} parent=0
    _
  %s9 = ssub.s32 1, %s7
  %s10 = scalar_select 0, %s9, %s7
  $region1: #{naive_lstm_cell.1} parent=0
    #allocation2 [shape = 'u8[4096]{0}', space=vmem, size = 0x1000, scoped, tag = 'output window, operand 0, single buffered']
    #allocation3 [shape = 's32[1]{0}', space=sflag, size = 0x4, scoped, tag = 'scoped memory for naive_lstm_cell.1']
    #allocation4 [shape = 'u8[4096]{0}', space=vmem, size = 0x1000, scoped, tag = 'output window, operand 1, single buffered']
    #allocation5 [shape = 's32[1]{0}', space=sflag, size = 0x4, scoped, tag = 'scoped memory for naive_lstm_cell.1']
    %11 = vsyncpa [#allocation3], 0
    %12 = vsyncpa [#allocation5], 0
    // Predicated region
    $region2: #{naive_lstm_cell.1} parent=1 // pred_check
      _
    $region3: #{naive_lstm_cell.1} parent=1 // pred_check_branch
      %14 = sbr.rel (0) target = $region5
    $region4: #{naive_lstm_cell.1} parent=1 // pred_region
      _
    $region5: #{naive_lstm_cell.1} parent=1 // pred_fallthru
      _
    // Predicated region
    $region6: #{naive_lstm_cell.1} parent=1 // pred_check
      _
    $region7: #{naive_lstm_cell.1} parent=1 // pred_check_branch
      %16 = sbr.rel (0) target = $region9
    $region8: #{naive_lstm_cell.1} parent=1 // pred_region
      _
    $region9: #{naive_lstm_cell.1} parent=1 // pred_fallthru
      _
    // Predicated region
    $region10: #{naive_lstm_cell.1} parent=1 // pred_check
      _
    $region11: #{naive_lstm_cell.1} parent=1 // pred_check_branch
      %18 = sbr.rel (0) target = $region13
    $region12: #{naive_lstm_cell.1} parent=1 // pred_region
      _
    $region13: #{naive_lstm_cell.1} parent=1 // pred_fallthru
      _
    // Predicated region
    $region14: #{naive_lstm_cell.1} parent=1 // pred_check
      _
    $region15: #{naive_lstm_cell.1} parent=1 // pred_check_branch
      %20 = sbr.rel (0) target = $region17
    $region16: #{naive_lstm_cell.1} parent=1 // pred_region
      _
    $region17: #{naive_lstm_cell.1} parent=1 // pred_fallthru
      _
    %v21 = vld [vmem:[%s0] sm:$0xff]
    %v22 = vld [vmem:[%s0 + $0x8] sm:$0xff]
    %v23 = vld [vmem:[%s1] sm:$0xff]
    %v24 = vld [vmem:[%s2] sm:$0xff]
    %v25 = vld [vmem:[%s2 + $0x8] sm:$0xff]
    %v26 = vld [vmem:[%s2 + $0x10] sm:$0xff]
    %v27 = vld [vmem:[%s2 + $0x18] sm:$0xff]
    %v28 = vld [vmem:[%s2 + $0x20] sm:$0xff]
    %v29 = vld [vmem:[%s2 + $0x28] sm:$0xff]
    %v30 = vld [vmem:[%s2 + $0x30] sm:$0xff]
    %v31 = vld [vmem:[%s2 + $0x38] sm:$0xff]
    %v32 = vld [vmem:[%s2 + $0x40] sm:$0xff]
    %v33 = vld [vmem:[%s2 + $0x48] sm:$0xff]
    %v34 = vld [vmem:[%s2 + $0x50] sm:$0xff]
    %v35 = vld [vmem:[%s2 + $0x58] sm:$0xff]
    %v36 = vld [vmem:[%s2 + $0x60] sm:$0xff]
    %v37 = vld [vmem:[%s2 + $0x68] sm:$0xff]
    %v38 = vld [vmem:[%s2 + $0x70] sm:$0xff]
    %v39 = vld [vmem:[%s2 + $0x78] sm:$0xff]
    %v40 = vld [vmem:[%s2 + $0x80] sm:$0xff]
    %v41 = vld [vmem:[%s2 + $0x88] sm:$0xff]
    %v42 = vld [vmem:[%s2 + $0x90] sm:$0xff]
    %v43 = vld [vmem:[%s2 + $0x98] sm:$0xff]
    %v44 = vld [vmem:[%s2 + $0xa0] sm:$0xff]
    %v45 = vld [vmem:[%s2 + $0xa8] sm:$0xff]
    %v46 = vld [vmem:[%s2 + $0xb0] sm:$0xff]
    %v47 = vld [vmem:[%s2 + $0xb8] sm:$0xff]
    %v48 = vld [vmem:[%s2 + $0xc0] sm:$0xff]
    %v49 = vld [vmem:[%s2 + $0xc8] sm:$0xff]
    %v50 = vld [vmem:[%s2 + $0xd0] sm:$0xff]
    %v51 = vld [vmem:[%s2 + $0xd8] sm:$0xff]
    %v52 = vld [vmem:[%s2 + $0xe0] sm:$0xff]
    %v53 = vld [vmem:[%s2 + $0xe8] sm:$0xff]
    %v54 = vld [vmem:[%s2 + $0xf0] sm:$0xff]
    %v55 = vld [vmem:[%s2 + $0xf8] sm:$0xff]
    %v56 = vld [vmem:[%s2 + $0x100] sm:$0xff]
    %v57 = vld [vmem:[%s2 + $0x108] sm:$0xff]
    %v58 = vld [vmem:[%s2 + $0x110] sm:$0xff]
    %v59 = vld [vmem:[%s2 + $0x118] sm:$0xff]
    %v60 = vld [vmem:[%s2 + $0x120] sm:$0xff]
    %v61 = vld [vmem:[%s2 + $0x128] sm:$0xff]
    %v62 = vld [vmem:[%s2 + $0x130] sm:$0xff]
    %v63 = vld [vmem:[%s2 + $0x138] sm:$0xff]
    %v64 = vld [vmem:[%s2 + $0x140] sm:$0xff]
    %v65 = vld [vmem:[%s2 + $0x148] sm:$0xff]
    %v66 = vld [vmem:[%s2 + $0x150] sm:$0xff]
    %v67 = vld [vmem:[%s2 + $0x158] sm:$0xff]
    %v68 = vld [vmem:[%s2 + $0x160] sm:$0xff]
    %v69 = vld [vmem:[%s2 + $0x168] sm:$0xff]
    %v70 = vld [vmem:[%s2 + $0x170] sm:$0xff]
    %v71 = vld [vmem:[%s2 + $0x178] sm:$0xff]
    %v72 = vld [vmem:[%s2 + $0x180] sm:$0xff]
    %v73 = vld [vmem:[%s2 + $0x188] sm:$0xff]
    %v74 = vld [vmem:[%s2 + $0x190] sm:$0xff]
    %v75 = vld [vmem:[%s2 + $0x198] sm:$0xff]
    %v76 = vld [vmem:[%s2 + $0x1a0] sm:$0xff]
    %v77 = vld [vmem:[%s2 + $0x1a8] sm:$0xff]
    %v78 = vld [vmem:[%s2 + $0x1b0] sm:$0xff]
    %v79 = vld [vmem:[%s2 + $0x1b8] sm:$0xff]
    %v80 = vld [vmem:[%s2 + $0x1c0] sm:$0xff]
    %v81 = vld [vmem:[%s2 + $0x1c8] sm:$0xff]
    %v82 = vld [vmem:[%s2 + $0x1d0] sm:$0xff]
    %v83 = vld [vmem:[%s2 + $0x1d8] sm:$0xff]
    %v84 = vld [vmem:[%s2 + $0x1e0] sm:$0xff]
    %v85 = vld [vmem:[%s2 + $0x1e8] sm:$0xff]
    %v86 = vld [vmem:[%s2 + $0x1f0] sm:$0xff]
    %v87 = vld [vmem:[%s2 + $0x1f8] sm:$0xff]
    %v88 = vld [vmem:[%s2 + $0x200] sm:$0xff]
    %v89 = vld [vmem:[%s2 + $0x208] sm:$0xff]
    %v90 = vld [vmem:[%s2 + $0x210] sm:$0xff]
    %v91 = vld [vmem:[%s2 + $0x218] sm:$0xff]
    %v92 = vld [vmem:[%s2 + $0x220] sm:$0xff]
    %v93 = vld [vmem:[%s2 + $0x228] sm:$0xff]
    %v94 = vld [vmem:[%s2 + $0x230] sm:$0xff]
    %v95 = vld [vmem:[%s2 + $0x238] sm:$0xff]
    %v96 = vld [vmem:[%s3] sm:$0xf]
    %v98 = vlaneseq
    %v99 = vshrl.u32 %v98, 7
    %v100 = vsub.s32 0, %v99
    %v101 = vrot.slane %v96, %v100
    %v102 = vlaneseq
    %v103 = vshrl.u32 %v102, 7
    %v104 = vsub.s32 1, %v103
    %v105 = vrot.slane %v96, %v104
    %v106 = vlaneseq
    %v107 = vshrl.u32 %v106, 7
    %v108 = vsub.s32 2, %v107
    %v109 = vrot.slane %v96, %v108
    %v110 = vlaneseq
    %v111 = vshrl.u32 %v110, 7
    %v112 = vsub.s32 3, %v111
    %v113 = vrot.slane %v96, %v112
    %vm118 = vcmask 130048
    %v120 = vsel %vm118, %v22, 0
    %122 = vmatprep.subr.mxu0 %v25
    %123 = vmatpush1.msra.mxu0 %v24
    %124 = vmatprep.subr.mxu0 %v29
    %125 = vmatpush1.msra.mxu0 %v28
    %126 = vmatprep.subr.mxu0 %v33
    %127 = vmatpush1.msra.mxu0 %v32
    %128 = vmatprep.subr.mxu0 %v37
    %129 = vmatpush1.msra.mxu0 %v36
    %130 = vmatprep.subr.mxu0 %v41
    %131 = vmatpush1.msra.mxu0 %v40
    %132 = vmatprep.subr.mxu0 %v45
    %133 = vmatpush1.msra.mxu0 %v44
    %134 = vmatprep.subr.mxu0 %v49
    %135 = vmatpush1.msra.mxu0 %v48
    %136 = vmatprep.subr.mxu0 %v53
    %137 = vmatpush1.msra.mxu0 %v52
    %138 = vmatprep.subr.mxu0 %v57
    %139 = vmatpush1.msra.mxu0 %v56
    %140 = vmatprep.subr.mxu0 %v61
    %141 = vmatpush1.msra.mxu0 %v60
    %142 = vmatprep.subr.mxu0 %v65
    %143 = vmatpush1.msra.mxu0 %v64
    %144 = vmatprep.subr.mxu0 %v69
    %145 = vmatpush1.msra.mxu0 %v68
    %146 = vmatprep.subr.mxu0 %v73
    %147 = vmatpush1.msra.mxu0 %v72
    %148 = vmatprep.subr.mxu0 %v77
    %149 = vmatpush1.msra.mxu0 %v76
    %150 = vmatprep.subr.mxu0 %v81
    %151 = vmatpush1.msra.mxu0 %v80
    %152 = vmatprep.subr.mxu0 %v85
    %153 = vmatpush1.msra.mxu0 %v84
    %154 = vmatprep.subr.mxu0 %v89
    %155 = vmatpush1.msra.mxu0 %v88
    %156 = vmatprep.subr.mxu0 %v93
    %157 = vmatpush1.msra.mxu0 %v92
    %158 = vmatprep.subr.mxu0 0.0
    %159 = vmatpush1.msra.mxu0 0.0
    %160 = vmatprep.subr.mxu0 0.0
    %161 = vmatpush1.msra.mxu0 0.0
    %162 = vmatprep.subr.mxu0 0.0
    %163 = vmatpush1.msra.mxu0 0.0
    %164 = vmatprep.subr.mxu0 0.0
    %165 = vmatpush1.msra.mxu0 0.0
    %166 = vmatprep.subr.mxu0 0.0
    %167 = vmatpush1.msra.mxu0 0.0
    %168 = vmatprep.subr.mxu0 0.0
    %169 = vmatpush1.msra.mxu0 0.0
    %170 = vmatprep.subr.mxu0 0.0
    %171 = vmatpush1.msra.mxu0 0.0
    %172 = vmatprep.subr.mxu0 0.0
    %173 = vmatpush1.msra.mxu0 0.0
    %174 = vmatprep.subr.mxu0 0.0
    %175 = vmatpush1.msra.mxu0 0.0
    %176 = vmatprep.subr.mxu0 0.0
    %177 = vmatpush1.msra.mxu0 0.0
    %178 = vmatprep.subr.mxu0 0.0
    %179 = vmatpush1.msra.mxu0 0.0
    %180 = vmatprep.subr.mxu0 0.0
    %181 = vmatpush1.msra.mxu0 0.0
    %182 = vmatprep.subr.mxu0 0.0
    %183 = vmatpush1.msra.mxu0 0.0
    %184 = vmatprep.subr.mxu0 0.0
    %185 = vmatpush1.msra.mxu0 0.0
    %186 = vmatprep.mubr.f32.mxu0 %v120
    %187 = vmatmul.mubr.f32.gmra.mrb[0].mxu0 %v21
    %v188 = vpop.f32.mrb[0].mxu0
    %v189 = vadd.f32 %v101, %v188
    %v190 = vpop.f32.mrb[0].mxu0
    %v191 = vadd.f32 %v105, %v190
    %192 = vdwg.mxu0
    %193 = vmatprep.subr.mxu0 %v27
    %194 = vmatpush1.msra.mxu0 %v26
    %195 = vmatprep.subr.mxu0 %v31
    %196 = vmatpush1.msra.mxu0 %v30
    %197 = vmatprep.subr.mxu0 %v35
    %198 = vmatpush1.msra.mxu0 %v34
    %199 = vmatprep.subr.mxu0 %v39
    %200 = vmatpush1.msra.mxu0 %v38
    %201 = vmatprep.subr.mxu0 %v43
    %202 = vmatpush1.msra.mxu0 %v42
    %203 = vmatprep.subr.mxu0 %v47
    %204 = vmatpush1.msra.mxu0 %v46
    %205 = vmatprep.subr.mxu0 %v51
    %206 = vmatpush1.msra.mxu0 %v50
    %207 = vmatprep.subr.mxu0 %v55
    %208 = vmatpush1.msra.mxu0 %v54
    %209 = vmatprep.subr.mxu0 %v59
    %210 = vmatpush1.msra.mxu0 %v58
    %211 = vmatprep.subr.mxu0 %v63
    %212 = vmatpush1.msra.mxu0 %v62
    %213 = vmatprep.subr.mxu0 %v67
    %214 = vmatpush1.msra.mxu0 %v66
    %215 = vmatprep.subr.mxu0 %v71
    %216 = vmatpush1.msra.mxu0 %v70
    %217 = vmatprep.subr.mxu0 %v75
    %218 = vmatpush1.msra.mxu0 %v74
    %219 = vmatprep.subr.mxu0 %v79
    %220 = vmatpush1.msra.mxu0 %v78
    %221 = vmatprep.subr.mxu0 %v83
    %222 = vmatpush1.msra.mxu0 %v82
    %223 = vmatprep.subr.mxu0 %v87
    %224 = vmatpush1.msra.mxu0 %v86
    %225 = vmatprep.subr.mxu0 %v91
    %226 = vmatpush1.msra.mxu0 %v90
    %227 = vmatprep.subr.mxu0 %v95
    %228 = vmatpush1.msra.mxu0 %v94
    %229 = vmatprep.subr.mxu0 0.0
    %230 = vmatpush1.msra.mxu0 0.0
    %231 = vmatprep.subr.mxu0 0.0
    %232 = vmatpush1.msra.mxu0 0.0
    %233 = vmatprep.subr.mxu0 0.0
    %234 = vmatpush1.msra.mxu0 0.0
    %235 = vmatprep.subr.mxu0 0.0
    %236 = vmatpush1.msra.mxu0 0.0
    %237 = vmatprep.subr.mxu0 0.0
    %238 = vmatpush1.msra.mxu0 0.0
    %239 = vmatprep.subr.mxu0 0.0
    %240 = vmatpush1.msra.mxu0 0.0
    %241 = vmatprep.subr.mxu0 0.0
    %242 = vmatpush1.msra.mxu0 0.0
    %243 = vmatprep.subr.mxu0 0.0
    %244 = vmatpush1.msra.mxu0 0.0
    %245 = vmatprep.subr.mxu0 0.0
    %246 = vmatpush1.msra.mxu0 0.0
    %247 = vmatprep.subr.mxu0 0.0
    %248 = vmatpush1.msra.mxu0 0.0
    %249 = vmatprep.subr.mxu0 0.0
    %250 = vmatpush1.msra.mxu0 0.0
    %251 = vmatprep.subr.mxu0 0.0
    %252 = vmatpush1.msra.mxu0 0.0
    %253 = vmatprep.subr.mxu0 0.0
    %254 = vmatpush1.msra.mxu0 0.0
    %255 = vmatprep.subr.mxu0 0.0
    %256 = vmatpush1.msra.mxu0 0.0
    %257 = vmatprep.mubr.f32.mxu0 %v120
    %258 = vmatmul.mubr.f32.gmra.mrb[0].mxu0 %v21
    %v259 = vpop.f32.mrb[0].mxu0
    %v260 = vadd.f32 %v109, %v259
    %v261 = vpop.f32.mrb[0].mxu0
    %v262 = vadd.f32 %v113, %v261
    %263 = vdwg.mxu0
    %v264 = vxor.u32 %v189, 2147483648
    %v265 = vmul.f32 %v264, 1.442695
    %v266 = vpow.pop %v265
    %v267 = vadd.f32 %v266, 1.0
    %v268 = vrcp.pop %v267
    %v269 = vmul.f32 1.0, %v268
    %v270 = vxor.u32 %v191, 2147483648
    %v271 = vmul.f32 %v270, 1.442695
    %v272 = vpow.pop %v271
    %v273 = vadd.f32 %v272, 1.0
    %v274 = vrcp.pop %v273
    %v275 = vmul.f32 1.0, %v274
    %v276 = vtanh.pop %v262
    %v277 = vmul.f32 %v23, %v269
    %v278 = vmul.f32 %v276, %v275
    %v279 = vadd.f32 %v277, %v278
    %v280 = vxor.u32 %v260, 2147483648
    %v281 = vmul.f32 %v280, 1.442695
    %v282 = vpow.pop %v281
    %v283 = vadd.f32 %v282, 1.0
    %v284 = vrcp.pop %v283
    %v285 = vmul.f32 1.0, %v284
    %v286 = vtanh.pop %v279
    %v287 = vmul.f32 %v285, %v286
    %288 = vst [vmem:[#allocation2] sm:$0xff] %v287
    %289 = vst [vmem:[#allocation4] sm:$0xff] %v279
    // Predicated region
    $region18: #{naive_lstm_cell.1} parent=1 // pred_check
      _
    $region19: #{naive_lstm_cell.1} parent=1 // pred_check_branch
      %291 = sbr.rel (0) target = $region21
    $region20: #{naive_lstm_cell.1} parent=1 // pred_region
      %s293 = ssub.s32 128, 128
      %294 = vsyncadd [#allocation3], %s293
      %s296 = sshll.u32 [#allocation2], 4
      %s297 = int_to_ptr.vmem [resolvable:$true] %s296
      %299 = dma.vmem_to_hbm [thread:$0]  %s297, 128, %s4, [#allocation3]
    $region21: #{naive_lstm_cell.1} parent=1 // pred_fallthru
      _
    // Predicated region
    $region22: #{naive_lstm_cell.1} parent=1 // pred_check
      _
    $region23: #{naive_lstm_cell.1} parent=1 // pred_check_branch
      %301 = sbr.rel (0) target = $region25
    $region24: #{naive_lstm_cell.1} parent=1 // pred_region
      %s303 = ssub.s32 128, 128
      %304 = vsyncadd [#allocation5], %s303
      %s306 = sshll.u32 [#allocation4], 4
      %s307 = int_to_ptr.vmem [resolvable:$true] %s306
      %309 = dma.vmem_to_hbm [thread:$0]  %s307, 128, %s5, [#allocation5]
    $region25: #{naive_lstm_cell.1} parent=1 // pred_fallthru
      _
    // Predicated region
    $region26: #{naive_lstm_cell.1} parent=1 // pred_check
      _
    $region27: #{naive_lstm_cell.1} parent=1 // pred_check_branch
      %311 = sbr.rel (0) target = $region29
    $region28: #{naive_lstm_cell.1} parent=1 // pred_region
      %312 = dma.done [#allocation3], 128
    $region29: #{naive_lstm_cell.1} parent=1 // pred_fallthru
      _
    // Predicated region
    $region30: #{naive_lstm_cell.1} parent=1 // pred_check
      _
    $region31: #{naive_lstm_cell.1} parent=1 // pred_check_branch
      %314 = sbr.rel (0) target = $region33
    $region32: #{naive_lstm_cell.1} parent=1 // pred_region
      %315 = dma.done [#allocation5], 128
    $region33: #{naive_lstm_cell.1} parent=1 // pred_fallthru
      _
    %316 = vsyncpa [#allocation3], 1
    %317 = vsyncpa [#allocation5], 1

</llo_original>
